<compile_context>
chip_gen: v5e
topology: v5e:2x2
jax: 0.10.0
libtpu: 0.0.40
codegen_flags: <defaults>
</compile_context>

<pallas_src>
import functools

import jax
import jax.numpy as jnp
from jax.experimental import pallas as pl
from jax.experimental.pallas import tpu as pltpu

INPUT_SIZE = 200
HIDDEN_SIZE = 150
OUTPUT_SIZE = 100
NUM_HID_LAYERS = 5

# Lane-padded (multiple-of-128) feature widths.
IN_PAD = 256
HID_PAD = 256
OUT_PAD = 128

DEFAULT_BLOCK_B = 1024  # batch tile (multiple of 8 sublanes), amortizes MXU fill/drain


def _round_up(n, m):
    return ((n + m - 1) // m) * m


def _pad_to(a, shape):
    return jnp.pad(a, [(0, s - d) for d, s in zip(a.shape, shape)])


def _mlp_kernel(x_ref, w_in_ref, b_in_ref, w_h_ref, b_h_ref,
                w_out_ref, b_out_ref, out_ref):
    cdt = w_in_ref.dtype  # MXU input dtype (f32 or bf16); accumulation stays f32
    # input layer + ReLU
    h = jnp.dot(x_ref[...].astype(cdt), w_in_ref[...],
                preferred_element_type=jnp.float32) + b_in_ref[...]
    h = jnp.maximum(h, 0.0)
    # 5 hidden layers + ReLU (unrolled; static indexing into stacked weights)
    for i in range(NUM_HID_LAYERS):
        h = jnp.dot(h.astype(cdt), w_h_ref[i],
                    preferred_element_type=jnp.float32) + b_h_ref[i]
        h = jnp.maximum(h, 0.0)
    # output layer (no activation); lane-dense 128-wide store
    out_ref[...] = (jnp.dot(h.astype(cdt), w_out_ref[...],
                            preferred_element_type=jnp.float32)
                    + b_out_ref[...]).astype(out_ref.dtype)


def sequence_predictor(x, params, *, block_b=DEFAULT_BLOCK_B,
                       compute_dtype=jnp.float32):
    """x: (B, 200) float32 -> (B, 100) float32."""
    w_in, b_in, w_h, b_h, w_out, b_out = params
    B = x.shape[0]

    # --- batch tiling --------------------------------------------------------
    tb = min(block_b, _round_up(max(B, 1), 8))
    b_pad = _round_up(B, tb)
    grid = (b_pad // tb,)

    # --- zero-pad features to lane multiples; cast weights once --------------
    xp = _pad_to(x.astype(jnp.float32), (b_pad, IN_PAD))
    w_in_p = _pad_to(w_in, (IN_PAD, HID_PAD)).astype(compute_dtype)
    b_in_p = _pad_to(b_in, (1, HID_PAD)).astype(jnp.float32)
    w_h_p = _pad_to(w_h, (NUM_HID_LAYERS, HID_PAD, HID_PAD)).astype(compute_dtype)
    b_h_p = _pad_to(b_h, (NUM_HID_LAYERS, 1, HID_PAD)).astype(jnp.float32)
    w_out_p = _pad_to(w_out, (HID_PAD, OUT_PAD)).astype(compute_dtype)
    b_out_p = _pad_to(b_out, (1, OUT_PAD)).astype(jnp.float32)

    # --- advisory cost estimate ----------------------------------------------
    w_itemsize = jnp.dtype(compute_dtype).itemsize
    wbytes = ((w_in_p.size + w_h_p.size + w_out_p.size) * w_itemsize
              + (b_in_p.size + b_h_p.size + b_out_p.size) * 4)
    flops = 2 * b_pad * (IN_PAD * HID_PAD
                         + NUM_HID_LAYERS * HID_PAD * HID_PAD
                         + HID_PAD * OUT_PAD)
    bytes_accessed = xp.size * 4 + b_pad * OUT_PAD * 4 + wbytes

    weight_specs = [
        pl.BlockSpec((IN_PAD, HID_PAD), lambda i: (0, 0)),
        pl.BlockSpec((1, HID_PAD), lambda i: (0, 0)),
        pl.BlockSpec((NUM_HID_LAYERS, HID_PAD, HID_PAD), lambda i: (0, 0, 0)),
        pl.BlockSpec((NUM_HID_LAYERS, 1, HID_PAD), lambda i: (0, 0, 0)),
        pl.BlockSpec((HID_PAD, OUT_PAD), lambda i: (0, 0)),
        pl.BlockSpec((1, OUT_PAD), lambda i: (0, 0)),
    ]

    out = pl.pallas_call(
        _mlp_kernel,
        out_shape=jax.ShapeDtypeStruct((b_pad, OUT_PAD), jnp.float32),
        grid=grid,
        in_specs=[pl.BlockSpec((tb, IN_PAD), lambda i: (i, 0))] + weight_specs,
        out_specs=pl.BlockSpec((tb, OUT_PAD), lambda i: (i, 0)),
        compiler_params=pltpu.CompilerParams(
            dimension_semantics=("parallel",),
            vmem_limit_bytes=32 * 1024 * 1024),
        cost_estimate=pl.CostEstimate(
            flops=flops, transcendentals=0, bytes_accessed=bytes_accessed),
    )(xp, w_in_p, b_in_p, w_h_p, b_h_p, w_out_p, b_out_p)

    # drop batch + lane padding
    return out[:B, :OUTPUT_SIZE]


def init_params(key):
    """Deterministic init mimicking nn.Linear's U(-1/sqrt(fan_in), +1/sqrt(fan_in))."""
    ks = jax.random.split(key, 8)

    def linear(kw, kb, fan_in, fan_out):
        bound = 1.0 / jnp.sqrt(float(fan_in))
        w = jax.random.uniform(kw, (fan_in, fan_out), jnp.float32, -bound, bound)
        b = jax.random.uniform(kb, (1, fan_out), jnp.float32, -bound, bound)
        return w, b

    w_in, b_in = linear(ks[0], ks[1], INPUT_SIZE, HIDDEN_SIZE)

    w_h_list, b_h_list = [], []
    hk = jax.random.split(ks[2], 2 * NUM_HID_LAYERS)
    for i in range(NUM_HID_LAYERS):
        w, b = linear(hk[2 * i], hk[2 * i + 1], HIDDEN_SIZE, HIDDEN_SIZE)
        w_h_list.append(w)
        b_h_list.append(b)
    w_h = jnp.stack(w_h_list)            # (5, 150, 150)
    b_h = jnp.stack(b_h_list)            # (5, 1, 150)

    w_out, b_out = linear(ks[3], ks[4], HIDDEN_SIZE, OUTPUT_SIZE)
    return (w_in, b_in, w_h, b_h, w_out, b_out)


def reference_forward(x, params):
    """Plain-JAX reference reproducing the PyTorch forward exactly."""
    w_in, b_in, w_h, b_h, w_out, b_out = params
    h = jnp.maximum(x @ w_in + b_in, 0.0)
    for i in range(NUM_HID_LAYERS):
        h = jnp.maximum(h @ w_h[i] + b_h[i], 0.0)
    return h @ w_out + b_out


if __name__ == "__main__":
    key = jax.random.PRNGKey(0)
    k_params, k_x, k_x2 = jax.random.split(key, 3)

    params = init_params(k_params)

    # --- small f32 check (tight tolerance) ---------------------------------
    batch = 8
    x = jax.random.normal(k_x, (batch, INPUT_SIZE), jnp.float32)
    fwd_f32 = jax.jit(functools.partial(sequence_predictor))
    out = jax.block_until_ready(fwd_f32(x, params))
    ref = reference_forward(x, params)
    assert out.shape == (batch, OUTPUT_SIZE)
    assert jnp.allclose(out, ref, atol=1e-4, rtol=1e-4)

    # --- multi-step grid with ragged batch (exercises batch tiling) --------
    x2 = jax.random.normal(k_x2, (20, INPUT_SIZE), jnp.float32)
    fwd_tiled = jax.jit(functools.partial(sequence_predictor, block_b=8))
    out2 = jax.block_until_ready(fwd_tiled(x2, params))
    ref2 = reference_forward(x2, params)
    assert out2.shape == (20, OUTPUT_SIZE)
    assert jnp.allclose(out2, ref2, atol=1e-4, rtol=1e-4)

    # --- bf16-input / f32-accumulate path (v6e/v7x MXU), loose tolerance ----
    fwd_bf16 = jax.jit(functools.partial(sequence_predictor,
                                         compute_dtype=jnp.bfloat16))
    out_bf16 = jax.block_until_ready(fwd_bf16(x, params))
    assert out_bf16.shape == (batch, OUTPUT_SIZE)
    assert jnp.allclose(out_bf16, ref, atol=5e-2, rtol=5e-2)

    print("KERNEL_OK")
</pallas_src>

<mosaic_0001>
module attributes {stable_mosaic.version = 11 : i64} {
  func.func @_mlp_kernel(%arg0: i32, %arg1: memref<8x256xf32, #tpu.memory_space<vmem>>, %arg2: memref<256x256xf32, #tpu.memory_space<vmem>>, %arg3: memref<1x256xf32, #tpu.memory_space<vmem>>, %arg4: memref<5x256x256xf32, #tpu.memory_space<vmem>>, %arg5: memref<5x1x256xf32, #tpu.memory_space<vmem>>, %arg6: memref<256x128xf32, #tpu.memory_space<vmem>>, %arg7: memref<1x128xf32, #tpu.memory_space<vmem>>, %arg8: memref<8x128xf32, #tpu.memory_space<vmem>>) attributes {dimension_semantics = [#tpu.dimension_semantics<parallel>], iteration_bounds = array<i64: 1>, scalar_prefetch = 0 : i64, scratch_operands = 0 : i64, tpu.core_type = #tpu.core_type<tc>, window_params = [{transform_indices = @transform_0, window_bounds = array<i64: 8, 256>}, {pipeline_mode = #tpu.pipeline_mode<synchronous>, transform_indices = @transform_1, window_bounds = array<i64: 256, 256>}, {pipeline_mode = #tpu.pipeline_mode<synchronous>, transform_indices = @transform_2, window_bounds = array<i64: 1, 256>}, {pipeline_mode = #tpu.pipeline_mode<synchronous>, transform_indices = @transform_3, window_bounds = array<i64: 5, 256, 256>}, {pipeline_mode = #tpu.pipeline_mode<synchronous>, transform_indices = @transform_4, window_bounds = array<i64: 5, 1, 256>}, {pipeline_mode = #tpu.pipeline_mode<synchronous>, transform_indices = @transform_5, window_bounds = array<i64: 256, 128>}, {pipeline_mode = #tpu.pipeline_mode<synchronous>, transform_indices = @transform_6, window_bounds = array<i64: 1, 128>}, {transform_indices = @transform_7, window_bounds = array<i64: 8, 128>}]} {
    %c0 = arith.constant 0 : index
    %c0_0 = arith.constant 0 : index
    %0 = vector.load %arg1[%c0, %c0_0] : memref<8x256xf32, #tpu.memory_space<vmem>>, vector<8x256xf32>
    %c0_1 = arith.constant 0 : index
    %c0_2 = arith.constant 0 : index
    %1 = vector.load %arg2[%c0_1, %c0_2] : memref<256x256xf32, #tpu.memory_space<vmem>>, vector<256x256xf32>
    %cst = arith.constant dense<0.000000e+00> : vector<8x256xf32>
    %2 = tpu.matmul %0, %1, %cst {dimension_numbers = #tpu.dot_dimension_numbers<[1], [0], [0], [1], [0, 0, 1, 1], [], []>} : vector<8x256xf32>, vector<256x256xf32>, vector<8x256xf32> -> vector<8x256xf32>
    %c0_3 = arith.constant 0 : index
    %c0_4 = arith.constant 0 : index
    %3 = vector.load %arg3[%c0_3, %c0_4] : memref<1x256xf32, #tpu.memory_space<vmem>>, vector<1x256xf32>
    %4 = vector.broadcast %3 : vector<1x256xf32> to vector<8x256xf32>
    %5 = arith.addf %2, %4 : vector<8x256xf32>
    %cst_5 = arith.constant 0.000000e+00 : f32
    %6 = vector.broadcast %cst_5 : f32 to vector<8x256xf32>
    %7 = arith.maximumf %5, %6 : vector<8x256xf32>
    %c0_6 = arith.constant 0 : index
    %c0_7 = arith.constant 0 : index
    %c0_8 = arith.constant 0 : index
    %8 = vector.load %arg4[%c0_6, %c0_7, %c0_8] : memref<5x256x256xf32, #tpu.memory_space<vmem>>, vector<1x256x256xf32>
    %9 = vector.shape_cast %8 : vector<1x256x256xf32> to vector<256x256xf32>
    %cst_9 = arith.constant dense<0.000000e+00> : vector<8x256xf32>
    %10 = tpu.matmul %7, %9, %cst_9 {dimension_numbers = #tpu.dot_dimension_numbers<[1], [0], [0], [1], [0, 0, 1, 1], [], []>} : vector<8x256xf32>, vector<256x256xf32>, vector<8x256xf32> -> vector<8x256xf32>
    %c0_10 = arith.constant 0 : index
    %c0_11 = arith.constant 0 : index
    %c0_12 = arith.constant 0 : index
    %11 = vector.load %arg5[%c0_10, %c0_11, %c0_12] : memref<5x1x256xf32, #tpu.memory_space<vmem>>, vector<1x1x256xf32>
    %12 = vector.shape_cast %11 : vector<1x1x256xf32> to vector<1x256xf32>
    %13 = vector.broadcast %12 : vector<1x256xf32> to vector<8x256xf32>
    %14 = arith.addf %10, %13 : vector<8x256xf32>
    %cst_13 = arith.constant 0.000000e+00 : f32
    %15 = vector.broadcast %cst_13 : f32 to vector<8x256xf32>
    %16 = arith.maximumf %14, %15 : vector<8x256xf32>
    %c1 = arith.constant 1 : index
    %c0_14 = arith.constant 0 : index
    %c0_15 = arith.constant 0 : index
    %17 = vector.load %arg4[%c1, %c0_14, %c0_15] : memref<5x256x256xf32, #tpu.memory_space<vmem>>, vector<1x256x256xf32>
    %18 = vector.shape_cast %17 : vector<1x256x256xf32> to vector<256x256xf32>
    %cst_16 = arith.constant dense<0.000000e+00> : vector<8x256xf32>
    %19 = tpu.matmul %16, %18, %cst_16 {dimension_numbers = #tpu.dot_dimension_numbers<[1], [0], [0], [1], [0, 0, 1, 1], [], []>} : vector<8x256xf32>, vector<256x256xf32>, vector<8x256xf32> -> vector<8x256xf32>
    %c1_17 = arith.constant 1 : index
    %c0_18 = arith.constant 0 : index
    %c0_19 = arith.constant 0 : index
    %20 = vector.load %arg5[%c1_17, %c0_18, %c0_19] : memref<5x1x256xf32, #tpu.memory_space<vmem>>, vector<1x1x256xf32>
    %21 = vector.shape_cast %20 : vector<1x1x256xf32> to vector<1x256xf32>
    %22 = vector.broadcast %21 : vector<1x256xf32> to vector<8x256xf32>
    %23 = arith.addf %19, %22 : vector<8x256xf32>
    %cst_20 = arith.constant 0.000000e+00 : f32
    %24 = vector.broadcast %cst_20 : f32 to vector<8x256xf32>
    %25 = arith.maximumf %23, %24 : vector<8x256xf32>
    %c2 = arith.constant 2 : index
    %c0_21 = arith.constant 0 : index
    %c0_22 = arith.constant 0 : index
    %26 = vector.load %arg4[%c2, %c0_21, %c0_22] : memref<5x256x256xf32, #tpu.memory_space<vmem>>, vector<1x256x256xf32>
    %27 = vector.shape_cast %26 : vector<1x256x256xf32> to vector<256x256xf32>
    %cst_23 = arith.constant dense<0.000000e+00> : vector<8x256xf32>
    %28 = tpu.matmul %25, %27, %cst_23 {dimension_numbers = #tpu.dot_dimension_numbers<[1], [0], [0], [1], [0, 0, 1, 1], [], []>} : vector<8x256xf32>, vector<256x256xf32>, vector<8x256xf32> -> vector<8x256xf32>
    %c2_24 = arith.constant 2 : index
    %c0_25 = arith.constant 0 : index
    %c0_26 = arith.constant 0 : index
    %29 = vector.load %arg5[%c2_24, %c0_25, %c0_26] : memref<5x1x256xf32, #tpu.memory_space<vmem>>, vector<1x1x256xf32>
    %30 = vector.shape_cast %29 : vector<1x1x256xf32> to vector<1x256xf32>
    %31 = vector.broadcast %30 : vector<1x256xf32> to vector<8x256xf32>
    %32 = arith.addf %28, %31 : vector<8x256xf32>
    %cst_27 = arith.constant 0.000000e+00 : f32
    %33 = vector.broadcast %cst_27 : f32 to vector<8x256xf32>
    %34 = arith.maximumf %32, %33 : vector<8x256xf32>
    %c3 = arith.constant 3 : index
    %c0_28 = arith.constant 0 : index
    %c0_29 = arith.constant 0 : index
    %35 = vector.load %arg4[%c3, %c0_28, %c0_29] : memref<5x256x256xf32, #tpu.memory_space<vmem>>, vector<1x256x256xf32>
    %36 = vector.shape_cast %35 : vector<1x256x256xf32> to vector<256x256xf32>
    %cst_30 = arith.constant dense<0.000000e+00> : vector<8x256xf32>
    %37 = tpu.matmul %34, %36, %cst_30 {dimension_numbers = #tpu.dot_dimension_numbers<[1], [0], [0], [1], [0, 0, 1, 1], [], []>} : vector<8x256xf32>, vector<256x256xf32>, vector<8x256xf32> -> vector<8x256xf32>
    %c3_31 = arith.constant 3 : index
    %c0_32 = arith.constant 0 : index
    %c0_33 = arith.constant 0 : index
    %38 = vector.load %arg5[%c3_31, %c0_32, %c0_33] : memref<5x1x256xf32, #tpu.memory_space<vmem>>, vector<1x1x256xf32>
    %39 = vector.shape_cast %38 : vector<1x1x256xf32> to vector<1x256xf32>
    %40 = vector.broadcast %39 : vector<1x256xf32> to vector<8x256xf32>
    %41 = arith.addf %37, %40 : vector<8x256xf32>
    %cst_34 = arith.constant 0.000000e+00 : f32
    %42 = vector.broadcast %cst_34 : f32 to vector<8x256xf32>
    %43 = arith.maximumf %41, %42 : vector<8x256xf32>
    %c4 = arith.constant 4 : index
    %c0_35 = arith.constant 0 : index
    %c0_36 = arith.constant 0 : index
    %44 = vector.load %arg4[%c4, %c0_35, %c0_36] : memref<5x256x256xf32, #tpu.memory_space<vmem>>, vector<1x256x256xf32>
    %45 = vector.shape_cast %44 : vector<1x256x256xf32> to vector<256x256xf32>
    %cst_37 = arith.constant dense<0.000000e+00> : vector<8x256xf32>
    %46 = tpu.matmul %43, %45, %cst_37 {dimension_numbers = #tpu.dot_dimension_numbers<[1], [0], [0], [1], [0, 0, 1, 1], [], []>} : vector<8x256xf32>, vector<256x256xf32>, vector<8x256xf32> -> vector<8x256xf32>
    %c4_38 = arith.constant 4 : index
    %c0_39 = arith.constant 0 : index
    %c0_40 = arith.constant 0 : index
    %47 = vector.load %arg5[%c4_38, %c0_39, %c0_40] : memref<5x1x256xf32, #tpu.memory_space<vmem>>, vector<1x1x256xf32>
    %48 = vector.shape_cast %47 : vector<1x1x256xf32> to vector<1x256xf32>
    %49 = vector.broadcast %48 : vector<1x256xf32> to vector<8x256xf32>
    %50 = arith.addf %46, %49 : vector<8x256xf32>
    %cst_41 = arith.constant 0.000000e+00 : f32
    %51 = vector.broadcast %cst_41 : f32 to vector<8x256xf32>
    %52 = arith.maximumf %50, %51 : vector<8x256xf32>
    %c0_42 = arith.constant 0 : index
    %c0_43 = arith.constant 0 : index
    %53 = vector.load %arg6[%c0_42, %c0_43] : memref<256x128xf32, #tpu.memory_space<vmem>>, vector<256x128xf32>
    %cst_44 = arith.constant dense<0.000000e+00> : vector<8x128xf32>
    %54 = tpu.matmul %52, %53, %cst_44 {dimension_numbers = #tpu.dot_dimension_numbers<[1], [0], [0], [1], [0, 0, 1, 1], [], []>} : vector<8x256xf32>, vector<256x128xf32>, vector<8x128xf32> -> vector<8x128xf32>
    %c0_45 = arith.constant 0 : index
    %c0_46 = arith.constant 0 : index
    %55 = vector.load %arg7[%c0_45, %c0_46] : memref<1x128xf32, #tpu.memory_space<vmem>>, vector<1x128xf32>
    %56 = vector.broadcast %55 : vector<1x128xf32> to vector<8x128xf32>
    %57 = arith.addf %54, %56 : vector<8x128xf32>
    %c0_47 = arith.constant 0 : index
    %c0_48 = arith.constant 0 : index
    %58 = vector.load %arg8[%c0_47, %c0_48] : memref<8x128xf32, #tpu.memory_space<vmem>>, vector<8x128xf32>
    tpu.vector_store %arg8[%c0_47, %c0_48], %57 {strides = array<i32>} : memref<8x128xf32, #tpu.memory_space<vmem>>, vector<8x128xf32>,
    return
  }
  func.func @transform_0(%arg0: i32) -> (i32, i32) {
    %c0_i32 = arith.constant 0 : i32
    %c0_i32_0 = arith.constant 0 : i32
    return %arg0, %c0_i32 : i32, i32
  }
  func.func @transform_1(%arg0: i32) -> (i32, i32) {
    %c0_i32 = arith.constant 0 : i32
    %c0_i32_0 = arith.constant 0 : i32
    %c0_i32_1 = arith.constant 0 : i32
    return %c0_i32, %c0_i32_0 : i32, i32
  }
  func.func @transform_2(%arg0: i32) -> (i32, i32) {
    %c0_i32 = arith.constant 0 : i32
    %c0_i32_0 = arith.constant 0 : i32
    %c0_i32_1 = arith.constant 0 : i32
    return %c0_i32, %c0_i32_0 : i32, i32
  }
  func.func @transform_3(%arg0: i32) -> (i32, i32, i32) {
    %c0_i32 = arith.constant 0 : i32
    %c0_i32_0 = arith.constant 0 : i32
    %c0_i32_1 = arith.constant 0 : i32
    %c0_i32_2 = arith.constant 0 : i32
    return %c0_i32, %c0_i32_0, %c0_i32_1 : i32, i32, i32
  }
  func.func @transform_4(%arg0: i32) -> (i32, i32, i32) {
    %c0_i32 = arith.constant 0 : i32
    %c0_i32_0 = arith.constant 0 : i32
    %c0_i32_1 = arith.constant 0 : i32
    %c0_i32_2 = arith.constant 0 : i32
    return %c0_i32, %c0_i32_0, %c0_i32_1 : i32, i32, i32
  }
  func.func @transform_5(%arg0: i32) -> (i32, i32) {
    %c0_i32 = arith.constant 0 : i32
    %c0_i32_0 = arith.constant 0 : i32
    %c0_i32_1 = arith.constant 0 : i32
    return %c0_i32, %c0_i32_0 : i32, i32
  }
  func.func @transform_6(%arg0: i32) -> (i32, i32) {
    %c0_i32 = arith.constant 0 : i32
    %c0_i32_0 = arith.constant 0 : i32
    %c0_i32_1 = arith.constant 0 : i32
    return %c0_i32, %c0_i32_0 : i32, i32
  }
  func.func @transform_7(%arg0: i32) -> (i32, i32) {
    %c0_i32 = arith.constant 0 : i32
    %c0_i32_0 = arith.constant 0 : i32
    return %arg0, %c0_i32 : i32, i32
  }
}

</mosaic_0001>

<llo_original>
// kernel: sequence_predictor.1
$region0: #{sequence_predictor.1}
  #allocation0 [shape = 'u32[]', space=smem, size = 0x4, offset = 0x4, fixed_abs, tag = 'smem constant byte address 0x4 - core index']
  #allocation1 [shape = 'u32[72,128]{1,0:T(1,128)}', space=vmem, size = 0x9000, scoped, tag = 'internal scratch']
  %s0 = inlined_call_operand.vmem [shape: f32[8,256], index: 0, kind: input, shape index: {}]
  %s1 = inlined_call_operand.vmem [shape: f32[256,256], index: 1, kind: input, shape index: {}]
  %s2 = inlined_call_operand.vmem [shape: f32[1,256], index: 2, kind: input, shape index: {}]
  %s3 = inlined_call_operand.vmem [shape: f32[5,256,256], index: 3, kind: input, shape index: {}]
  %s4 = inlined_call_operand.vmem [shape: f32[5,1,256], index: 4, kind: input, shape index: {}]
  %s5 = inlined_call_operand.vmem [shape: f32[256,128], index: 5, kind: input, shape index: {}]
  %s6 = inlined_call_operand.vmem [shape: f32[1,128], index: 6, kind: input, shape index: {}]
  %s7 = inlined_call_operand.hbm [shape: f32[8,128], index: 7, kind: output, shape index: {}]
  %s8 = sld [smem:[#allocation0]]
  $region38: #{sequence_predictor.1} parent=0
    _
  %s10 = ssub.s32 1, %s8
  %s11 = scalar_select 0, %s10, %s8
  $region1: #{sequence_predictor.1} parent=0
    #allocation2 [shape = 'u8[4096]{0}', space=vmem, size = 0x1000, scoped, tag = 'output window, operand 0, single buffered']
    #allocation3 [shape = 's32[1]{0}', space=sflag, size = 0x4, scoped, tag = 'scoped memory for sequence_predictor.1']
    %12 = vsyncpa [#allocation3], 0
    // Predicated region
    $region2: #{sequence_predictor.1} parent=1 // pred_check
      _
    $region3: #{sequence_predictor.1} parent=1 // pred_check_branch
      %14 = sbr.rel (0) target = $region5
    $region4: #{sequence_predictor.1} parent=1 // pred_region
      _
    $region5: #{sequence_predictor.1} parent=1 // pred_fallthru
      _
    // Predicated region
    $region6: #{sequence_predictor.1} parent=1 // pred_check
      _
    $region7: #{sequence_predictor.1} parent=1 // pred_check_branch
      %16 = sbr.rel (0) target = $region9
    $region8: #{sequence_predictor.1} parent=1 // pred_region
      _
    $region9: #{sequence_predictor.1} parent=1 // pred_fallthru
      _
    // Predicated region
    $region10: #{sequence_predictor.1} parent=1 // pred_check
      _
    $region11: #{sequence_predictor.1} parent=1 // pred_check_branch
      %18 = sbr.rel (0) target = $region13
    $region12: #{sequence_predictor.1} parent=1 // pred_region
      _
    $region13: #{sequence_predictor.1} parent=1 // pred_fallthru
      _
    // Predicated region
    $region14: #{sequence_predictor.1} parent=1 // pred_check
      _
    $region15: #{sequence_predictor.1} parent=1 // pred_check_branch
      %20 = sbr.rel (0) target = $region17
    $region16: #{sequence_predictor.1} parent=1 // pred_region
      _
    $region17: #{sequence_predictor.1} parent=1 // pred_fallthru
      _
    // Predicated region
    $region18: #{sequence_predictor.1} parent=1 // pred_check
      _
    $region19: #{sequence_predictor.1} parent=1 // pred_check_branch
      %22 = sbr.rel (0) target = $region21
    $region20: #{sequence_predictor.1} parent=1 // pred_region
      _
    $region21: #{sequence_predictor.1} parent=1 // pred_fallthru
      _
    // Predicated region
    $region22: #{sequence_predictor.1} parent=1 // pred_check
      _
    $region23: #{sequence_predictor.1} parent=1 // pred_check_branch
      %24 = sbr.rel (0) target = $region25
    $region24: #{sequence_predictor.1} parent=1 // pred_region
      _
    $region25: #{sequence_predictor.1} parent=1 // pred_fallthru
      _
    // Predicated region
    $region26: #{sequence_predictor.1} parent=1 // pred_check
      _
    $region27: #{sequence_predictor.1} parent=1 // pred_check_branch
      %26 = sbr.rel (0) target = $region29
    $region28: #{sequence_predictor.1} parent=1 // pred_region
      _
    $region29: #{sequence_predictor.1} parent=1 // pred_fallthru
      _
    %v27 = vld [vmem:[%s0] sm:$0xff]
    %v28 = vld [vmem:[%s0 + $0x8] sm:$0xff]
    %v29 = vld [vmem:[%s1] sm:$0xff]
    %v30 = vld [vmem:[%s1 + $0x8] sm:$0xff]
    %v31 = vld [vmem:[%s1 + $0x10] sm:$0xff]
    %v32 = vld [vmem:[%s1 + $0x18] sm:$0xff]
    %v33 = vld [vmem:[%s1 + $0x20] sm:$0xff]
    %v34 = vld [vmem:[%s1 + $0x28] sm:$0xff]
    %v35 = vld [vmem:[%s1 + $0x30] sm:$0xff]
    %v36 = vld [vmem:[%s1 + $0x38] sm:$0xff]
    %v37 = vld [vmem:[%s1 + $0x40] sm:$0xff]
    %v38 = vld [vmem:[%s1 + $0x48] sm:$0xff]
    %v39 = vld [vmem:[%s1 + $0x50] sm:$0xff]
    %v40 = vld [vmem:[%s1 + $0x58] sm:$0xff]
    %v41 = vld [vmem:[%s1 + $0x60] sm:$0xff]
    %v42 = vld [vmem:[%s1 + $0x68] sm:$0xff]
    %v43 = vld [vmem:[%s1 + $0x70] sm:$0xff]
    %v44 = vld [vmem:[%s1 + $0x78] sm:$0xff]
    %v45 = vld [vmem:[%s1 + $0x80] sm:$0xff]
    %v46 = vld [vmem:[%s1 + $0x88] sm:$0xff]
    %v47 = vld [vmem:[%s1 + $0x90] sm:$0xff]
    %v48 = vld [vmem:[%s1 + $0x98] sm:$0xff]
    %v49 = vld [vmem:[%s1 + $0xa0] sm:$0xff]
    %v50 = vld [vmem:[%s1 + $0xa8] sm:$0xff]
    %v51 = vld [vmem:[%s1 + $0xb0] sm:$0xff]
    %v52 = vld [vmem:[%s1 + $0xb8] sm:$0xff]
    %v53 = vld [vmem:[%s1 + $0xc0] sm:$0xff]
    %v54 = vld [vmem:[%s1 + $0xc8] sm:$0xff]
    %v55 = vld [vmem:[%s1 + $0xd0] sm:$0xff]
    %v56 = vld [vmem:[%s1 + $0xd8] sm:$0xff]
    %v57 = vld [vmem:[%s1 + $0xe0] sm:$0xff]
    %v58 = vld [vmem:[%s1 + $0xe8] sm:$0xff]
    %v59 = vld [vmem:[%s1 + $0xf0] sm:$0xff]
    %v60 = vld [vmem:[%s1 + $0xf8] sm:$0xff]
    %v61 = vld [vmem:[%s1 + $0x100] sm:$0xff]
    %v62 = vld [vmem:[%s1 + $0x108] sm:$0xff]
    %v63 = vld [vmem:[%s1 + $0x110] sm:$0xff]
    %v64 = vld [vmem:[%s1 + $0x118] sm:$0xff]
    %v65 = vld [vmem:[%s1 + $0x120] sm:$0xff]
    %v66 = vld [vmem:[%s1 + $0x128] sm:$0xff]
    %v67 = vld [vmem:[%s1 + $0x130] sm:$0xff]
    %v68 = vld [vmem:[%s1 + $0x138] sm:$0xff]
    %v69 = vld [vmem:[%s1 + $0x140] sm:$0xff]
    %v70 = vld [vmem:[%s1 + $0x148] sm:$0xff]
    %v71 = vld [vmem:[%s1 + $0x150] sm:$0xff]
    %v72 = vld [vmem:[%s1 + $0x158] sm:$0xff]
    %v73 = vld [vmem:[%s1 + $0x160] sm:$0xff]
    %v74 = vld [vmem:[%s1 + $0x168] sm:$0xff]
    %v75 = vld [vmem:[%s1 + $0x170] sm:$0xff]
    %v76 = vld [vmem:[%s1 + $0x178] sm:$0xff]
    %v77 = vld [vmem:[%s1 + $0x180] sm:$0xff]
    %v78 = vld [vmem:[%s1 + $0x188] sm:$0xff]
    %v79 = vld [vmem:[%s1 + $0x190] sm:$0xff]
    %v80 = vld [vmem:[%s1 + $0x198] sm:$0xff]
    %v81 = vld [vmem:[%s1 + $0x1a0] sm:$0xff]
    %v82 = vld [vmem:[%s1 + $0x1a8] sm:$0xff]
    %v83 = vld [vmem:[%s1 + $0x1b0] sm:$0xff]
    %v84 = vld [vmem:[%s1 + $0x1b8] sm:$0xff]
    %v85 = vld [vmem:[%s1 + $0x1c0] sm:$0xff]
    %v86 = vld [vmem:[%s1 + $0x1c8] sm:$0xff]
    %v87 = vld [vmem:[%s1 + $0x1d0] sm:$0xff]
    %v88 = vld [vmem:[%s1 + $0x1d8] sm:$0xff]
    %v89 = vld [vmem:[%s1 + $0x1e0] sm:$0xff]
    %v90 = vld [vmem:[%s1 + $0x1e8] sm:$0xff]
    %v91 = vld [vmem:[%s1 + $0x1f0] sm:$0xff]
    %v92 = vld [vmem:[%s1 + $0x1f8] sm:$0xff]
    %v93 = vld [vmem:[%s2] sm:$0x3]
    %v95 = vperm.slane %v93, 0
    %v96 = vperm.slane %v93, 1
    %99 = vmatpush.msra.mxu0 %v59
    %100 = vmatpush.msra.mxu0 %v57
    %101 = vmatpush.msra.mxu0 %v55
    %102 = vmatpush.msra.mxu0 %v53
    %103 = vmatpush.msra.mxu0 %v51
    %104 = vmatpush.msra.mxu0 %v49
    %105 = vmatpush.msra.mxu0 %v47
    %106 = vmatpush.msra.mxu0 %v45
    %107 = vmatpush.msra.mxu0 %v43
    %108 = vmatpush.msra.mxu0 %v41
    %109 = vmatpush.msra.mxu0 %v39
    %110 = vmatpush.msra.mxu0 %v37
    %111 = vmatpush.msra.mxu0 %v35
    %112 = vmatpush.msra.mxu0 %v33
    %113 = vmatpush.msra.mxu0 %v31
    %114 = vmatpush.msra.mxu0 %v29
    %115 = vmatmul.f32.gmra.mxu0 %v27
    %v116 = vpop.f32.mrf.mxu0
    %v117 = vadd.f32 %v95, %v116
    %118 = vdwg.mxu0
    %119 = vmatpush.msra.mxu0 %v91
    %120 = vmatpush.msra.mxu0 %v89
    %121 = vmatpush.msra.mxu0 %v87
    %122 = vmatpush.msra.mxu0 %v85
    %123 = vmatpush.msra.mxu0 %v83
    %124 = vmatpush.msra.mxu0 %v81
    %125 = vmatpush.msra.mxu0 %v79
    %126 = vmatpush.msra.mxu0 %v77
    %127 = vmatpush.msra.mxu0 %v75
    %128 = vmatpush.msra.mxu0 %v73
    %129 = vmatpush.msra.mxu0 %v71
    %130 = vmatpush.msra.mxu0 %v69
    %131 = vmatpush.msra.mxu0 %v67
    %132 = vmatpush.msra.mxu0 %v65
    %133 = vmatpush.msra.mxu0 %v63
    %134 = vmatpush.msra.mxu0 %v61
    %135 = vmatmul.f32.gmra.mxu0 %v28
    %v136 = vpop.f32.mrf.mxu0
    %v137 = vadd.f32 %v117, %v136
    %138 = vdwg.mxu0
    %139 = vmatpush.msra.mxu0 %v60
    %140 = vmatpush.msra.mxu0 %v58
    %141 = vmatpush.msra.mxu0 %v56
    %142 = vmatpush.msra.mxu0 %v54
    %143 = vmatpush.msra.mxu0 %v52
    %144 = vmatpush.msra.mxu0 %v50
    %145 = vmatpush.msra.mxu0 %v48
    %146 = vmatpush.msra.mxu0 %v46
    %147 = vmatpush.msra.mxu0 %v44
    %148 = vmatpush.msra.mxu0 %v42
    %149 = vmatpush.msra.mxu0 %v40
    %150 = vmatpush.msra.mxu0 %v38
    %151 = vmatpush.msra.mxu0 %v36
    %152 = vmatpush.msra.mxu0 %v34
    %153 = vmatpush.msra.mxu0 %v32
    %154 = vmatpush.msra.mxu0 %v30
    %155 = vmatmul.f32.gmra.mxu0 %v27
    %v156 = vpop.f32.mrf.mxu0
    %v157 = vadd.f32 %v96, %v156
    %158 = vdwg.mxu0
    %159 = vmatpush.msra.mxu0 %v92
    %160 = vmatpush.msra.mxu0 %v90
    %161 = vmatpush.msra.mxu0 %v88
    %162 = vmatpush.msra.mxu0 %v86
    %163 = vmatpush.msra.mxu0 %v84
    %164 = vmatpush.msra.mxu0 %v82
    %165 = vmatpush.msra.mxu0 %v80
    %166 = vmatpush.msra.mxu0 %v78
    %167 = vmatpush.msra.mxu0 %v76
    %168 = vmatpush.msra.mxu0 %v74
    %169 = vmatpush.msra.mxu0 %v72
    %170 = vmatpush.msra.mxu0 %v70
    %171 = vmatpush.msra.mxu0 %v68
    %172 = vmatpush.msra.mxu0 %v66
    %173 = vmatpush.msra.mxu0 %v64
    %174 = vmatpush.msra.mxu0 %v62
    %175 = vmatmul.f32.gmra.mxu0 %v28
    %v176 = vpop.f32.mrf.mxu0
    %v177 = vadd.f32 %v157, %v176
    %178 = vdwg.mxu0
    %v179 = vmax.f32 %v137, 0.0
    %v180 = vmax.f32 %v177, 0.0
    %v181 = vld [vmem:[%s3] sm:$0xff]
    %v182 = vld [vmem:[%s3 + $0x8] sm:$0xff]
    %v183 = vld [vmem:[%s3 + $0x10] sm:$0xff]
    %v184 = vld [vmem:[%s3 + $0x18] sm:$0xff]
    %v185 = vld [vmem:[%s3 + $0x20] sm:$0xff]
    %v186 = vld [vmem:[%s3 + $0x28] sm:$0xff]
    %v187 = vld [vmem:[%s3 + $0x30] sm:$0xff]
    %v188 = vld [vmem:[%s3 + $0x38] sm:$0xff]
    %v189 = vld [vmem:[%s3 + $0x40] sm:$0xff]
    %v190 = vld [vmem:[%s3 + $0x48] sm:$0xff]
    %v191 = vld [vmem:[%s3 + $0x50] sm:$0xff]
    %v192 = vld [vmem:[%s3 + $0x58] sm:$0xff]
    %v193 = vld [vmem:[%s3 + $0x60] sm:$0xff]
    %v194 = vld [vmem:[%s3 + $0x68] sm:$0xff]
    %v195 = vld [vmem:[%s3 + $0x70] sm:$0xff]
    %v196 = vld [vmem:[%s3 + $0x78] sm:$0xff]
    %v197 = vld [vmem:[%s3 + $0x80] sm:$0xff]
    %v198 = vld [vmem:[%s3 + $0x88] sm:$0xff]
    %v199 = vld [vmem:[%s3 + $0x90] sm:$0xff]
    %v200 = vld [vmem:[%s3 + $0x98] sm:$0xff]
    %v201 = vld [vmem:[%s3 + $0xa0] sm:$0xff]
    %v202 = vld [vmem:[%s3 + $0xa8] sm:$0xff]
    %v203 = vld [vmem:[%s3 + $0xb0] sm:$0xff]
    %v204 = vld [vmem:[%s3 + $0xb8] sm:$0xff]
    %v205 = vld [vmem:[%s3 + $0xc0] sm:$0xff]
    %v206 = vld [vmem:[%s3 + $0xc8] sm:$0xff]
    %v207 = vld [vmem:[%s3 + $0xd0] sm:$0xff]
    %v208 = vld [vmem:[%s3 + $0xd8] sm:$0xff]
    %v209 = vld [vmem:[%s3 + $0xe0] sm:$0xff]
    %v210 = vld [vmem:[%s3 + $0xe8] sm:$0xff]
    %v211 = vld [vmem:[%s3 + $0xf0] sm:$0xff]
    %v212 = vld [vmem:[%s3 + $0xf8] sm:$0xff]
    %v213 = vld [vmem:[%s3 + $0x100] sm:$0xff]
    %v214 = vld [vmem:[%s3 + $0x108] sm:$0xff]
    %v215 = vld [vmem:[%s3 + $0x110] sm:$0xff]
    %v216 = vld [vmem:[%s3 + $0x118] sm:$0xff]
    %v217 = vld [vmem:[%s3 + $0x120] sm:$0xff]
    %v218 = vld [vmem:[%s3 + $0x128] sm:$0xff]
    %v219 = vld [vmem:[%s3 + $0x130] sm:$0xff]
    %v220 = vld [vmem:[%s3 + $0x138] sm:$0xff]
    %v221 = vld [vmem:[%s3 + $0x140] sm:$0xff]
    %v222 = vld [vmem:[%s3 + $0x148] sm:$0xff]
    %v223 = vld [vmem:[%s3 + $0x150] sm:$0xff]
    %v224 = vld [vmem:[%s3 + $0x158] sm:$0xff]
    %v225 = vld [vmem:[%s3 + $0x160] sm:$0xff]
    %v226 = vld [vmem:[%s3 + $0x168] sm:$0xff]
    %v227 = vld [vmem:[%s3 + $0x170] sm:$0xff]
    %v228 = vld [vmem:[%s3 + $0x178] sm:$0xff]
    %v229 = vld [vmem:[%s3 + $0x180] sm:$0xff]
    %v230 = vld [vmem:[%s3 + $0x188] sm:$0xff]
    %v231 = vld [vmem:[%s3 + $0x190] sm:$0xff]
    %v232 = vld [vmem:[%s3 + $0x198] sm:$0xff]
    %v233 = vld [vmem:[%s3 + $0x1a0] sm:$0xff]
    %v234 = vld [vmem:[%s3 + $0x1a8] sm:$0xff]
    %v235 = vld [vmem:[%s3 + $0x1b0] sm:$0xff]
    %v236 = vld [vmem:[%s3 + $0x1b8] sm:$0xff]
    %v237 = vld [vmem:[%s3 + $0x1c0] sm:$0xff]
    %v238 = vld [vmem:[%s3 + $0x1c8] sm:$0xff]
    %v239 = vld [vmem:[%s3 + $0x1d0] sm:$0xff]
    %v240 = vld [vmem:[%s3 + $0x1d8] sm:$0xff]
    %v241 = vld [vmem:[%s3 + $0x1e0] sm:$0xff]
    %v242 = vld [vmem:[%s3 + $0x1e8] sm:$0xff]
    %v243 = vld [vmem:[%s3 + $0x1f0] sm:$0xff]
    %v244 = vld [vmem:[%s3 + $0x1f8] sm:$0xff]
    %v245 = vld [vmem:[%s4] sm:$0x3]
    %v247 = vperm.slane %v245, 0
    %v248 = vperm.slane %v245, 1
    %251 = vmatpush.msra.mxu0 %v211
    %252 = vmatpush.msra.mxu0 %v209
    %253 = vmatpush.msra.mxu0 %v207
    %254 = vmatpush.msra.mxu0 %v205
    %255 = vmatpush.msra.mxu0 %v203
    %256 = vmatpush.msra.mxu0 %v201
    %257 = vmatpush.msra.mxu0 %v199
    %258 = vmatpush.msra.mxu0 %v197
    %259 = vmatpush.msra.mxu0 %v195
    %260 = vmatpush.msra.mxu0 %v193
    %261 = vmatpush.msra.mxu0 %v191
    %262 = vmatpush.msra.mxu0 %v189
    %263 = vmatpush.msra.mxu0 %v187
    %264 = vmatpush.msra.mxu0 %v185
    %265 = vmatpush.msra.mxu0 %v183
    %266 = vmatpush.msra.mxu0 %v181
    %267 = vmatmul.f32.gmra.mxu0 %v179
    %v268 = vpop.f32.mrf.mxu0
    %v269 = vadd.f32 %v247, %v268
    %270 = vdwg.mxu0
    %271 = vmatpush.msra.mxu0 %v243
    %272 = vmatpush.msra.mxu0 %v241
    %273 = vmatpush.msra.mxu0 %v239
    %274 = vmatpush.msra.mxu0 %v237
    %275 = vmatpush.msra.mxu0 %v235
    %276 = vmatpush.msra.mxu0 %v233
    %277 = vmatpush.msra.mxu0 %v231
    %278 = vmatpush.msra.mxu0 %v229
    %279 = vmatpush.msra.mxu0 %v227
    %280 = vmatpush.msra.mxu0 %v225
    %281 = vmatpush.msra.mxu0 %v223
    %282 = vmatpush.msra.mxu0 %v221
    %283 = vmatpush.msra.mxu0 %v219
    %284 = vmatpush.msra.mxu0 %v217
    %285 = vmatpush.msra.mxu0 %v215
    %286 = vmatpush.msra.mxu0 %v213
    %287 = vmatmul.f32.gmra.mxu0 %v180
    %v288 = vpop.f32.mrf.mxu0
    %v289 = vadd.f32 %v269, %v288
    %290 = vdwg.mxu0
    %291 = vmatpush.msra.mxu0 %v212
    %292 = vmatpush.msra.mxu0 %v210
    %293 = vmatpush.msra.mxu0 %v208
    %294 = vmatpush.msra.mxu0 %v206
    %295 = vmatpush.msra.mxu0 %v204
    %296 = vmatpush.msra.mxu0 %v202
    %297 = vmatpush.msra.mxu0 %v200
    %298 = vmatpush.msra.mxu0 %v198
    %299 = vmatpush.msra.mxu0 %v196
    %300 = vmatpush.msra.mxu0 %v194
    %301 = vmatpush.msra.mxu0 %v192
    %302 = vmatpush.msra.mxu0 %v190
    %303 = vmatpush.msra.mxu0 %v188
    %304 = vmatpush.msra.mxu0 %v186
    %305 = vmatpush.msra.mxu0 %v184
    %306 = vmatpush.msra.mxu0 %v182
    %307 = vmatmul.f32.gmra.mxu0 %v179
    %v308 = vpop.f32.mrf.mxu0
    %v309 = vadd.f32 %v248, %v308
    %310 = vdwg.mxu0
    %311 = vmatpush.msra.mxu0 %v244
    %312 = vmatpush.msra.mxu0 %v242
    %313 = vmatpush.msra.mxu0 %v240
    %314 = vmatpush.msra.mxu0 %v238
    %315 = vmatpush.msra.mxu0 %v236
    %316 = vmatpush.msra.mxu0 %v234
    %317 = vmatpush.msra.mxu0 %v232
    %318 = vmatpush.msra.mxu0 %v230
    %319 = vmatpush.msra.mxu0 %v228
    %320 = vmatpush.msra.mxu0 %v226
    %321 = vmatpush.msra.mxu0 %v224
    %322 = vmatpush.msra.mxu0 %v222
    %323 = vmatpush.msra.mxu0 %v220
    %324 = vmatpush.msra.mxu0 %v218
    %325 = vmatpush.msra.mxu0 %v216
    %326 = vmatpush.msra.mxu0 %v214
    %327 = vmatmul.f32.gmra.mxu0 %v180
    %v328 = vpop.f32.mrf.mxu0
    %v329 = vadd.f32 %v309, %v328
    %330 = vdwg.mxu0
    %v331 = vmax.f32 %v289, 0.0
    %v332 = vmax.f32 %v329, 0.0
    %s333 = scalar_lea.vmem %s3, 512
    %v334 = vld [vmem:[%s333] sm:$0xff]
    %v335 = vld [vmem:[%s333 + $0x8] sm:$0xff]
    %v336 = vld [vmem:[%s333 + $0x10] sm:$0xff]
    %v337 = vld [vmem:[%s333 + $0x18] sm:$0xff]
    %v338 = vld [vmem:[%s333 + $0x20] sm:$0xff]
    %v339 = vld [vmem:[%s333 + $0x28] sm:$0xff]
    %v340 = vld [vmem:[%s333 + $0x30] sm:$0xff]
    %v341 = vld [vmem:[%s333 + $0x38] sm:$0xff]
    %v342 = vld [vmem:[%s333 + $0x40] sm:$0xff]
    %v343 = vld [vmem:[%s333 + $0x48] sm:$0xff]
    %v344 = vld [vmem:[%s333 + $0x50] sm:$0xff]
    %v345 = vld [vmem:[%s333 + $0x58] sm:$0xff]
    %v346 = vld [vmem:[%s333 + $0x60] sm:$0xff]
    %v347 = vld [vmem:[%s333 + $0x68] sm:$0xff]
    %v348 = vld [vmem:[%s333 + $0x70] sm:$0xff]
    %v349 = vld [vmem:[%s333 + $0x78] sm:$0xff]
    %v350 = vld [vmem:[%s333 + $0x80] sm:$0xff]
    %v351 = vld [vmem:[%s333 + $0x88] sm:$0xff]
    %v352 = vld [vmem:[%s333 + $0x90] sm:$0xff]
    %v353 = vld [vmem:[%s333 + $0x98] sm:$0xff]
    %v354 = vld [vmem:[%s333 + $0xa0] sm:$0xff]
    %v355 = vld [vmem:[%s333 + $0xa8] sm:$0xff]
    %v356 = vld [vmem:[%s333 + $0xb0] sm:$0xff]
    %v357 = vld [vmem:[%s333 + $0xb8] sm:$0xff]
    %v358 = vld [vmem:[%s333 + $0xc0] sm:$0xff]
    %v359 = vld [vmem:[%s333 + $0xc8] sm:$0xff]
    %v360 = vld [vmem:[%s333 + $0xd0] sm:$0xff]
    %v361 = vld [vmem:[%s333 + $0xd8] sm:$0xff]
    %v362 = vld [vmem:[%s333 + $0xe0] sm:$0xff]
    %v363 = vld [vmem:[%s333 + $0xe8] sm:$0xff]
    %v364 = vld [vmem:[%s333 + $0xf0] sm:$0xff]
    %v365 = vld [vmem:[%s333 + $0xf8] sm:$0xff]
    %v366 = vld [vmem:[%s333 + $0x100] sm:$0xff]
    %v367 = vld [vmem:[%s333 + $0x108] sm:$0xff]
    %v368 = vld [vmem:[%s333 + $0x110] sm:$0xff]
    %v369 = vld [vmem:[%s333 + $0x118] sm:$0xff]
    %v370 = vld [vmem:[%s333 + $0x120] sm:$0xff]
    %v371 = vld [vmem:[%s333 + $0x128] sm:$0xff]
    %v372 = vld [vmem:[%s333 + $0x130] sm:$0xff]
    %v373 = vld [vmem:[%s333 + $0x138] sm:$0xff]
    %v374 = vld [vmem:[%s333 + $0x140] sm:$0xff]
    %v375 = vld [vmem:[%s333 + $0x148] sm:$0xff]
    %v376 = vld [vmem:[%s333 + $0x150] sm:$0xff]
    %v377 = vld [vmem:[%s333 + $0x158] sm:$0xff]
    %v378 = vld [vmem:[%s333 + $0x160] sm:$0xff]
    %v379 = vld [vmem:[%s333 + $0x168] sm:$0xff]
    %v380 = vld [vmem:[%s333 + $0x170] sm:$0xff]
    %v381 = vld [vmem:[%s333 + $0x178] sm:$0xff]
    %v382 = vld [vmem:[%s333 + $0x180] sm:$0xff]
    %v383 = vld [vmem:[%s333 + $0x188] sm:$0xff]
    %v384 = vld [vmem:[%s333 + $0x190] sm:$0xff]
    %v385 = vld [vmem:[%s333 + $0x198] sm:$0xff]
    %v386 = vld [vmem:[%s333 + $0x1a0] sm:$0xff]
    %v387 = vld [vmem:[%s333 + $0x1a8] sm:$0xff]
    %v388 = vld [vmem:[%s333 + $0x1b0] sm:$0xff]
    %v389 = vld [vmem:[%s333 + $0x1b8] sm:$0xff]
    %v390 = vld [vmem:[%s333 + $0x1c0] sm:$0xff]
    %v391 = vld [vmem:[%s333 + $0x1c8] sm:$0xff]
    %v392 = vld [vmem:[%s333 + $0x1d0] sm:$0xff]
    %v393 = vld [vmem:[%s333 + $0x1d8] sm:$0xff]
    %v394 = vld [vmem:[%s333 + $0x1e0] sm:$0xff]
    %v395 = vld [vmem:[%s333 + $0x1e8] sm:$0xff]
    %v396 = vld [vmem:[%s333 + $0x1f0] sm:$0xff]
    %v397 = vld [vmem:[%s333 + $0x1f8] sm:$0xff]
    %s398 = scalar_lea.vmem %s4, 2
    %v399 = vld [vmem:[%s398] sm:$0x3]
    %v401 = vperm.slane %v399, 0
    %v402 = vperm.slane %v399, 1
    %405 = vmatpush.msra.mxu0 %v364
    %406 = vmatpush.msra.mxu0 %v362
    %407 = vmatpush.msra.mxu0 %v360
    %408 = vmatpush.msra.mxu0 %v358
    %409 = vmatpush.msra.mxu0 %v356
    %410 = vmatpush.msra.mxu0 %v354
    %411 = vmatpush.msra.mxu0 %v352
    %412 = vmatpush.msra.mxu0 %v350
    %413 = vmatpush.msra.mxu0 %v348
    %414 = vmatpush.msra.mxu0 %v346
    %415 = vmatpush.msra.mxu0 %v344
    %416 = vmatpush.msra.mxu0 %v342
    %417 = vmatpush.msra.mxu0 %v340
    %418 = vmatpush.msra.mxu0 %v338
    %419 = vmatpush.msra.mxu0 %v336
    %420 = vmatpush.msra.mxu0 %v334
    %421 = vmatmul.f32.gmra.mxu0 %v331
    %v422 = vpop.f32.mrf.mxu0
    %v423 = vadd.f32 %v401, %v422
    %424 = vdwg.mxu0
    %425 = vmatpush.msra.mxu0 %v396
    %426 = vmatpush.msra.mxu0 %v394
    %427 = vmatpush.msra.mxu0 %v392
    %428 = vmatpush.msra.mxu0 %v390
    %429 = vmatpush.msra.mxu0 %v388
    %430 = vmatpush.msra.mxu0 %v386
    %431 = vmatpush.msra.mxu0 %v384
    %432 = vmatpush.msra.mxu0 %v382
    %433 = vmatpush.msra.mxu0 %v380
    %434 = vmatpush.msra.mxu0 %v378
    %435 = vmatpush.msra.mxu0 %v376
    %436 = vmatpush.msra.mxu0 %v374
    %437 = vmatpush.msra.mxu0 %v372
    %438 = vmatpush.msra.mxu0 %v370
    %439 = vmatpush.msra.mxu0 %v368
    %440 = vmatpush.msra.mxu0 %v366
    %441 = vmatmul.f32.gmra.mxu0 %v332
    %v442 = vpop.f32.mrf.mxu0
    %v443 = vadd.f32 %v423, %v442
    %444 = vdwg.mxu0
    %445 = vmatpush.msra.mxu0 %v365
    %446 = vmatpush.msra.mxu0 %v363
    %447 = vmatpush.msra.mxu0 %v361
    %448 = vmatpush.msra.mxu0 %v359
    %449 = vmatpush.msra.mxu0 %v357
    %450 = vmatpush.msra.mxu0 %v355
    %451 = vmatpush.msra.mxu0 %v353
    %452 = vmatpush.msra.mxu0 %v351
    %453 = vmatpush.msra.mxu0 %v349
    %454 = vmatpush.msra.mxu0 %v347
    %455 = vmatpush.msra.mxu0 %v345
    %456 = vmatpush.msra.mxu0 %v343
    %457 = vmatpush.msra.mxu0 %v341
    %458 = vmatpush.msra.mxu0 %v339
    %459 = vmatpush.msra.mxu0 %v337
    %460 = vmatpush.msra.mxu0 %v335
    %461 = vmatmul.f32.gmra.mxu0 %v331
    %v462 = vpop.f32.mrf.mxu0
    %v463 = vadd.f32 %v402, %v462
    %464 = vdwg.mxu0
    %465 = vmatpush.msra.mxu0 %v397
    %466 = vmatpush.msra.mxu0 %v395
    %467 = vmatpush.msra.mxu0 %v393
    %468 = vmatpush.msra.mxu0 %v391
    %469 = vmatpush.msra.mxu0 %v389
    %470 = vmatpush.msra.mxu0 %v387
    %471 = vmatpush.msra.mxu0 %v385
    %472 = vmatpush.msra.mxu0 %v383
    %473 = vmatpush.msra.mxu0 %v381
    %474 = vmatpush.msra.mxu0 %v379
    %475 = vmatpush.msra.mxu0 %v377
    %476 = vmatpush.msra.mxu0 %v375
    %477 = vmatpush.msra.mxu0 %v373
    %478 = vmatpush.msra.mxu0 %v371
    %479 = vmatpush.msra.mxu0 %v369
    %480 = vmatpush.msra.mxu0 %v367
    %481 = vmatmul.f32.gmra.mxu0 %v332
    %v482 = vpop.f32.mrf.mxu0
    %v483 = vadd.f32 %v463, %v482
    %484 = vdwg.mxu0
    %v485 = vmax.f32 %v443, 0.0
    %v486 = vmax.f32 %v483, 0.0
    %s487 = scalar_lea.vmem %s3, 1024
    %v488 = vld [vmem:[%s487] sm:$0xff]
    %v489 = vld [vmem:[%s487 + $0x8] sm:$0xff]
    %v490 = vld [vmem:[%s487 + $0x10] sm:$0xff]
    %v491 = vld [vmem:[%s487 + $0x18] sm:$0xff]
    %v492 = vld [vmem:[%s487 + $0x20] sm:$0xff]
    %v493 = vld [vmem:[%s487 + $0x28] sm:$0xff]
    %v494 = vld [vmem:[%s487 + $0x30] sm:$0xff]
    %v495 = vld [vmem:[%s487 + $0x38] sm:$0xff]
    %v496 = vld [vmem:[%s487 + $0x40] sm:$0xff]
    %v497 = vld [vmem:[%s487 + $0x48] sm:$0xff]
    %v498 = vld [vmem:[%s487 + $0x50] sm:$0xff]
    %v499 = vld [vmem:[%s487 + $0x58] sm:$0xff]
    %v500 = vld [vmem:[%s487 + $0x60] sm:$0xff]
    %v501 = vld [vmem:[%s487 + $0x68] sm:$0xff]
    %v502 = vld [vmem:[%s487 + $0x70] sm:$0xff]
    %v503 = vld [vmem:[%s487 + $0x78] sm:$0xff]
    %v504 = vld [vmem:[%s487 + $0x80] sm:$0xff]
    %v505 = vld [vmem:[%s487 + $0x88] sm:$0xff]
    %v506 = vld [vmem:[%s487 + $0x90] sm:$0xff]
    %v507 = vld [vmem:[%s487 + $0x98] sm:$0xff]
    %v508 = vld [vmem:[%s487 + $0xa0] sm:$0xff]
    %v509 = vld [vmem:[%s487 + $0xa8] sm:$0xff]
    %v510 = vld [vmem:[%s487 + $0xb0] sm:$0xff]
    %v511 = vld [vmem:[%s487 + $0xb8] sm:$0xff]
    %v512 = vld [vmem:[%s487 + $0xc0] sm:$0xff]
    %v513 = vld [vmem:[%s487 + $0xc8] sm:$0xff]
    %v514 = vld [vmem:[%s487 + $0xd0] sm:$0xff]
    %v515 = vld [vmem:[%s487 + $0xd8] sm:$0xff]
    %v516 = vld [vmem:[%s487 + $0xe0] sm:$0xff]
    %v517 = vld [vmem:[%s487 + $0xe8] sm:$0xff]
    %v518 = vld [vmem:[%s487 + $0xf0] sm:$0xff]
    %v519 = vld [vmem:[%s487 + $0xf8] sm:$0xff]
    %v520 = vld [vmem:[%s487 + $0x100] sm:$0xff]
    %v521 = vld [vmem:[%s487 + $0x108] sm:$0xff]
    %v522 = vld [vmem:[%s487 + $0x110] sm:$0xff]
    %v523 = vld [vmem:[%s487 + $0x118] sm:$0xff]
    %v524 = vld [vmem:[%s487 + $0x120] sm:$0xff]
    %v525 = vld [vmem:[%s487 + $0x128] sm:$0xff]
    %v526 = vld [vmem:[%s487 + $0x130] sm:$0xff]
    %v527 = vld [vmem:[%s487 + $0x138] sm:$0xff]
    %v528 = vld [vmem:[%s487 + $0x140] sm:$0xff]
    %v529 = vld [vmem:[%s487 + $0x148] sm:$0xff]
    %v530 = vld [vmem:[%s487 + $0x150] sm:$0xff]
    %v531 = vld [vmem:[%s487 + $0x158] sm:$0xff]
    %v532 = vld [vmem:[%s487 + $0x160] sm:$0xff]
    %v533 = vld [vmem:[%s487 + $0x168] sm:$0xff]
    %v534 = vld [vmem:[%s487 + $0x170] sm:$0xff]
    %v535 = vld [vmem:[%s487 + $0x178] sm:$0xff]
    %v536 = vld [vmem:[%s487 + $0x180] sm:$0xff]
    %v537 = vld [vmem:[%s487 + $0x188] sm:$0xff]
    %v538 = vld [vmem:[%s487 + $0x190] sm:$0xff]
    %v539 = vld [vmem:[%s487 + $0x198] sm:$0xff]
    %v540 = vld [vmem:[%s487 + $0x1a0] sm:$0xff]
    %v541 = vld [vmem:[%s487 + $0x1a8] sm:$0xff]
    %v542 = vld [vmem:[%s487 + $0x1b0] sm:$0xff]
    %v543 = vld [vmem:[%s487 + $0x1b8] sm:$0xff]
    %v544 = vld [vmem:[%s487 + $0x1c0] sm:$0xff]
    %v545 = vld [vmem:[%s487 + $0x1c8] sm:$0xff]
    %v546 = vld [vmem:[%s487 + $0x1d0] sm:$0xff]
    %v547 = vld [vmem:[%s487 + $0x1d8] sm:$0xff]
    %v548 = vld [vmem:[%s487 + $0x1e0] sm:$0xff]
    %v549 = vld [vmem:[%s487 + $0x1e8] sm:$0xff]
    %v550 = vld [vmem:[%s487 + $0x1f0] sm:$0xff]
    %v551 = vld [vmem:[%s487 + $0x1f8] sm:$0xff]
    %s552 = scalar_lea.vmem %s4, 4
    %v553 = vld [vmem:[%s552] sm:$0x3]
    %v555 = vperm.slane %v553, 0
    %v556 = vperm.slane %v553, 1
    %559 = vmatpush.msra.mxu0 %v518
    %560 = vmatpush.msra.mxu0 %v516
    %561 = vmatpush.msra.mxu0 %v514
    %562 = vmatpush.msra.mxu0 %v512
    %563 = vmatpush.msra.mxu0 %v510
    %564 = vmatpush.msra.mxu0 %v508
    %565 = vmatpush.msra.mxu0 %v506
    %566 = vmatpush.msra.mxu0 %v504
    %567 = vmatpush.msra.mxu0 %v502
    %568 = vmatpush.msra.mxu0 %v500
    %569 = vmatpush.msra.mxu0 %v498
    %570 = vmatpush.msra.mxu0 %v496
    %571 = vmatpush.msra.mxu0 %v494
    %572 = vmatpush.msra.mxu0 %v492
    %573 = vmatpush.msra.mxu0 %v490
    %574 = vmatpush.msra.mxu0 %v488
    %575 = vmatmul.f32.gmra.mxu0 %v485
    %v576 = vpop.f32.mrf.mxu0
    %v577 = vadd.f32 %v555, %v576
    %578 = vdwg.mxu0
    %579 = vmatpush.msra.mxu0 %v550
    %580 = vmatpush.msra.mxu0 %v548
    %581 = vmatpush.msra.mxu0 %v546
    %582 = vmatpush.msra.mxu0 %v544
    %583 = vmatpush.msra.mxu0 %v542
    %584 = vmatpush.msra.mxu0 %v540
    %585 = vmatpush.msra.mxu0 %v538
    %586 = vmatpush.msra.mxu0 %v536
    %587 = vmatpush.msra.mxu0 %v534
    %588 = vmatpush.msra.mxu0 %v532
    %589 = vmatpush.msra.mxu0 %v530
    %590 = vmatpush.msra.mxu0 %v528
    %591 = vmatpush.msra.mxu0 %v526
    %592 = vmatpush.msra.mxu0 %v524
    %593 = vmatpush.msra.mxu0 %v522
    %594 = vmatpush.msra.mxu0 %v520
    %595 = vmatmul.f32.gmra.mxu0 %v486
    %v596 = vpop.f32.mrf.mxu0
    %v597 = vadd.f32 %v577, %v596
    %598 = vdwg.mxu0
    %599 = vmatpush.msra.mxu0 %v519
    %600 = vmatpush.msra.mxu0 %v517
    %601 = vmatpush.msra.mxu0 %v515
    %602 = vmatpush.msra.mxu0 %v513
    %603 = vmatpush.msra.mxu0 %v511
    %604 = vmatpush.msra.mxu0 %v509
    %605 = vmatpush.msra.mxu0 %v507
    %606 = vmatpush.msra.mxu0 %v505
    %607 = vmatpush.msra.mxu0 %v503
    %608 = vmatpush.msra.mxu0 %v501
    %609 = vmatpush.msra.mxu0 %v499
    %610 = vmatpush.msra.mxu0 %v497
    %611 = vmatpush.msra.mxu0 %v495
    %612 = vmatpush.msra.mxu0 %v493
    %613 = vmatpush.msra.mxu0 %v491
    %614 = vmatpush.msra.mxu0 %v489
    %615 = vmatmul.f32.gmra.mxu0 %v485
    %v616 = vpop.f32.mrf.mxu0
    %v617 = vadd.f32 %v556, %v616
    %618 = vdwg.mxu0
    %619 = vmatpush.msra.mxu0 %v551
    %620 = vmatpush.msra.mxu0 %v549
    %621 = vmatpush.msra.mxu0 %v547
    %622 = vmatpush.msra.mxu0 %v545
    %623 = vmatpush.msra.mxu0 %v543
    %624 = vmatpush.msra.mxu0 %v541
    %625 = vmatpush.msra.mxu0 %v539
    %626 = vmatpush.msra.mxu0 %v537
    %627 = vmatpush.msra.mxu0 %v535
    %628 = vmatpush.msra.mxu0 %v533
    %629 = vmatpush.msra.mxu0 %v531
    %630 = vmatpush.msra.mxu0 %v529
    %631 = vmatpush.msra.mxu0 %v527
    %632 = vmatpush.msra.mxu0 %v525
    %633 = vmatpush.msra.mxu0 %v523
    %634 = vmatpush.msra.mxu0 %v521
    %635 = vmatmul.f32.gmra.mxu0 %v486
    %v636 = vpop.f32.mrf.mxu0
    %v637 = vadd.f32 %v617, %v636
    %638 = vdwg.mxu0
    %v639 = vmax.f32 %v597, 0.0
    %v640 = vmax.f32 %v637, 0.0
    %s641 = scalar_lea.vmem %s3, 1536
    %v642 = vld [vmem:[%s641] sm:$0xff]
    %v643 = vld [vmem:[%s641 + $0x8] sm:$0xff]
    %v644 = vld [vmem:[%s641 + $0x10] sm:$0xff]
    %v645 = vld [vmem:[%s641 + $0x18] sm:$0xff]
    %v646 = vld [vmem:[%s641 + $0x20] sm:$0xff]
    %v647 = vld [vmem:[%s641 + $0x28] sm:$0xff]
    %v648 = vld [vmem:[%s641 + $0x30] sm:$0xff]
    %v649 = vld [vmem:[%s641 + $0x38] sm:$0xff]
    %v650 = vld [vmem:[%s641 + $0x40] sm:$0xff]
    %v651 = vld [vmem:[%s641 + $0x48] sm:$0xff]
    %v652 = vld [vmem:[%s641 + $0x50] sm:$0xff]
    %v653 = vld [vmem:[%s641 + $0x58] sm:$0xff]
    %v654 = vld [vmem:[%s641 + $0x60] sm:$0xff]
    %v655 = vld [vmem:[%s641 + $0x68] sm:$0xff]
    %v656 = vld [vmem:[%s641 + $0x70] sm:$0xff]
    %v657 = vld [vmem:[%s641 + $0x78] sm:$0xff]
    %v658 = vld [vmem:[%s641 + $0x80] sm:$0xff]
    %v659 = vld [vmem:[%s641 + $0x88] sm:$0xff]
    %v660 = vld [vmem:[%s641 + $0x90] sm:$0xff]
    %v661 = vld [vmem:[%s641 + $0x98] sm:$0xff]
    %v662 = vld [vmem:[%s641 + $0xa0] sm:$0xff]
    %v663 = vld [vmem:[%s641 + $0xa8] sm:$0xff]
    %v664 = vld [vmem:[%s641 + $0xb0] sm:$0xff]
    %v665 = vld [vmem:[%s641 + $0xb8] sm:$0xff]
    %v666 = vld [vmem:[%s641 + $0xc0] sm:$0xff]
    %v667 = vld [vmem:[%s641 + $0xc8] sm:$0xff]
    %v668 = vld [vmem:[%s641 + $0xd0] sm:$0xff]
    %v669 = vld [vmem:[%s641 + $0xd8] sm:$0xff]
    %v670 = vld [vmem:[%s641 + $0xe0] sm:$0xff]
    %v671 = vld [vmem:[%s641 + $0xe8] sm:$0xff]
    %v672 = vld [vmem:[%s641 + $0xf0] sm:$0xff]
    %v673 = vld [vmem:[%s641 + $0xf8] sm:$0xff]
    %v674 = vld [vmem:[%s641 + $0x100] sm:$0xff]
    %v675 = vld [vmem:[%s641 + $0x108] sm:$0xff]
    %v676 = vld [vmem:[%s641 + $0x110] sm:$0xff]
    %v677 = vld [vmem:[%s641 + $0x118] sm:$0xff]
    %v678 = vld [vmem:[%s641 + $0x120] sm:$0xff]
    %v679 = vld [vmem:[%s641 + $0x128] sm:$0xff]
    %v680 = vld [vmem:[%s641 + $0x130] sm:$0xff]
    %v681 = vld [vmem:[%s641 + $0x138] sm:$0xff]
    %v682 = vld [vmem:[%s641 + $0x140] sm:$0xff]
    %v683 = vld [vmem:[%s641 + $0x148] sm:$0xff]
    %v684 = vld [vmem:[%s641 + $0x150] sm:$0xff]
    %v685 = vld [vmem:[%s641 + $0x158] sm:$0xff]
    %v686 = vld [vmem:[%s641 + $0x160] sm:$0xff]
    %v687 = vld [vmem:[%s641 + $0x168] sm:$0xff]
    %v688 = vld [vmem:[%s641 + $0x170] sm:$0xff]
    %v689 = vld [vmem:[%s641 + $0x178] sm:$0xff]
    %v690 = vld [vmem:[%s641 + $0x180] sm:$0xff]
    %v691 = vld [vmem:[%s641 + $0x188] sm:$0xff]
    %v692 = vld [vmem:[%s641 + $0x190] sm:$0xff]
    %v693 = vld [vmem:[%s641 + $0x198] sm:$0xff]
    %v694 = vld [vmem:[%s641 + $0x1a0] sm:$0xff]
    %v695 = vld [vmem:[%s641 + $0x1a8] sm:$0xff]
    %v696 = vld [vmem:[%s641 + $0x1b0] sm:$0xff]
    %v697 = vld [vmem:[%s641 + $0x1b8] sm:$0xff]
    %v698 = vld [vmem:[%s641 + $0x1c0] sm:$0xff]
    %v699 = vld [vmem:[%s641 + $0x1c8] sm:$0xff]
    %v700 = vld [vmem:[%s641 + $0x1d0] sm:$0xff]
    %v701 = vld [vmem:[%s641 + $0x1d8] sm:$0xff]
    %v702 = vld [vmem:[%s641 + $0x1e0] sm:$0xff]
    %v703 = vld [vmem:[%s641 + $0x1e8] sm:$0xff]
    %v704 = vld [vmem:[%s641 + $0x1f0] sm:$0xff]
    %v705 = vld [vmem:[%s641 + $0x1f8] sm:$0xff]
    %s706 = scalar_lea.vmem %s4, 6
    %v707 = vld [vmem:[%s706] sm:$0x3]
    %v709 = vperm.slane %v707, 0
    %v710 = vperm.slane %v707, 1
    %713 = vmatpush.msra.mxu0 %v672
    %714 = vmatpush.msra.mxu0 %v670
    %715 = vmatpush.msra.mxu0 %v668
    %716 = vmatpush.msra.mxu0 %v666
    %717 = vmatpush.msra.mxu0 %v664
    %718 = vmatpush.msra.mxu0 %v662
    %719 = vmatpush.msra.mxu0 %v660
    %720 = vmatpush.msra.mxu0 %v658
    %721 = vmatpush.msra.mxu0 %v656
    %722 = vmatpush.msra.mxu0 %v654
    %723 = vmatpush.msra.mxu0 %v652
    %724 = vmatpush.msra.mxu0 %v650
    %725 = vmatpush.msra.mxu0 %v648
    %726 = vmatpush.msra.mxu0 %v646
    %727 = vmatpush.msra.mxu0 %v644
    %728 = vmatpush.msra.mxu0 %v642
    %729 = vmatmul.f32.gmra.mxu0 %v639
    %v730 = vpop.f32.mrf.mxu0
    %v731 = vadd.f32 %v709, %v730
    %732 = vdwg.mxu0
    %733 = vmatpush.msra.mxu0 %v704
    %734 = vmatpush.msra.mxu0 %v702
    %735 = vmatpush.msra.mxu0 %v700
    %736 = vmatpush.msra.mxu0 %v698
    %737 = vmatpush.msra.mxu0 %v696
    %738 = vmatpush.msra.mxu0 %v694
    %739 = vmatpush.msra.mxu0 %v692
    %740 = vmatpush.msra.mxu0 %v690
    %741 = vmatpush.msra.mxu0 %v688
    %742 = vmatpush.msra.mxu0 %v686
    %743 = vmatpush.msra.mxu0 %v684
    %744 = vmatpush.msra.mxu0 %v682
    %745 = vmatpush.msra.mxu0 %v680
    %746 = vmatpush.msra.mxu0 %v678
    %747 = vmatpush.msra.mxu0 %v676
    %748 = vmatpush.msra.mxu0 %v674
    %749 = vmatmul.f32.gmra.mxu0 %v640
    %v750 = vpop.f32.mrf.mxu0
    %v751 = vadd.f32 %v731, %v750
    %752 = vdwg.mxu0
    %753 = vmatpush.msra.mxu0 %v673
    %754 = vmatpush.msra.mxu0 %v671
    %755 = vmatpush.msra.mxu0 %v669
    %756 = vmatpush.msra.mxu0 %v667
    %757 = vmatpush.msra.mxu0 %v665
    %758 = vmatpush.msra.mxu0 %v663
    %759 = vmatpush.msra.mxu0 %v661
    %760 = vmatpush.msra.mxu0 %v659
    %761 = vmatpush.msra.mxu0 %v657
    %762 = vmatpush.msra.mxu0 %v655
    %763 = vmatpush.msra.mxu0 %v653
    %764 = vmatpush.msra.mxu0 %v651
    %765 = vmatpush.msra.mxu0 %v649
    %766 = vmatpush.msra.mxu0 %v647
    %767 = vmatpush.msra.mxu0 %v645
    %768 = vmatpush.msra.mxu0 %v643
    %769 = vmatmul.f32.gmra.mxu0 %v639
    %v770 = vpop.f32.mrf.mxu0
    %v771 = vadd.f32 %v710, %v770
    %772 = vdwg.mxu0
    %773 = vmatpush.msra.mxu0 %v705
    %774 = vmatpush.msra.mxu0 %v703
    %775 = vmatpush.msra.mxu0 %v701
    %776 = vmatpush.msra.mxu0 %v699
    %777 = vmatpush.msra.mxu0 %v697
    %778 = vmatpush.msra.mxu0 %v695
    %779 = vmatpush.msra.mxu0 %v693
    %780 = vmatpush.msra.mxu0 %v691
    %781 = vmatpush.msra.mxu0 %v689
    %782 = vmatpush.msra.mxu0 %v687
    %783 = vmatpush.msra.mxu0 %v685
    %784 = vmatpush.msra.mxu0 %v683
    %785 = vmatpush.msra.mxu0 %v681
    %786 = vmatpush.msra.mxu0 %v679
    %787 = vmatpush.msra.mxu0 %v677
    %788 = vmatpush.msra.mxu0 %v675
    %789 = vmatmul.f32.gmra.mxu0 %v640
    %v790 = vpop.f32.mrf.mxu0
    %v791 = vadd.f32 %v771, %v790
    %792 = vdwg.mxu0
    %v793 = vmax.f32 %v751, 0.0
    %v794 = vmax.f32 %v791, 0.0
    %s795 = scalar_lea.vmem %s3, 2048
    %v796 = vld [vmem:[%s795] sm:$0xff]
    %v797 = vld [vmem:[%s795 + $0x8] sm:$0xff]
    %v798 = vld [vmem:[%s795 + $0x10] sm:$0xff]
    %v799 = vld [vmem:[%s795 + $0x18] sm:$0xff]
    %v800 = vld [vmem:[%s795 + $0x20] sm:$0xff]
    %v801 = vld [vmem:[%s795 + $0x28] sm:$0xff]
    %v802 = vld [vmem:[%s795 + $0x30] sm:$0xff]
    %v803 = vld [vmem:[%s795 + $0x38] sm:$0xff]
    %v804 = vld [vmem:[%s795 + $0x40] sm:$0xff]
    %v805 = vld [vmem:[%s795 + $0x48] sm:$0xff]
    %v806 = vld [vmem:[%s795 + $0x50] sm:$0xff]
    %v807 = vld [vmem:[%s795 + $0x58] sm:$0xff]
    %v808 = vld [vmem:[%s795 + $0x60] sm:$0xff]
    %v809 = vld [vmem:[%s795 + $0x68] sm:$0xff]
    %v810 = vld [vmem:[%s795 + $0x70] sm:$0xff]
    %v811 = vld [vmem:[%s795 + $0x78] sm:$0xff]
    %v812 = vld [vmem:[%s795 + $0x80] sm:$0xff]
    %v813 = vld [vmem:[%s795 + $0x88] sm:$0xff]
    %v814 = vld [vmem:[%s795 + $0x90] sm:$0xff]
    %v815 = vld [vmem:[%s795 + $0x98] sm:$0xff]
    %v816 = vld [vmem:[%s795 + $0xa0] sm:$0xff]
    %v817 = vld [vmem:[%s795 + $0xa8] sm:$0xff]
    %v818 = vld [vmem:[%s795 + $0xb0] sm:$0xff]
    %v819 = vld [vmem:[%s795 + $0xb8] sm:$0xff]
    %v820 = vld [vmem:[%s795 + $0xc0] sm:$0xff]
    %v821 = vld [vmem:[%s795 + $0xc8] sm:$0xff]
    %v822 = vld [vmem:[%s795 + $0xd0] sm:$0xff]
    %v823 = vld [vmem:[%s795 + $0xd8] sm:$0xff]
    %v824 = vld [vmem:[%s795 + $0xe0] sm:$0xff]
    %v825 = vld [vmem:[%s795 + $0xe8] sm:$0xff]
    %v826 = vld [vmem:[%s795 + $0xf0] sm:$0xff]
    %v827 = vld [vmem:[%s795 + $0xf8] sm:$0xff]
    %v828 = vld [vmem:[%s795 + $0x100] sm:$0xff]
    %v829 = vld [vmem:[%s795 + $0x108] sm:$0xff]
    %v830 = vld [vmem:[%s795 + $0x110] sm:$0xff]
    %v831 = vld [vmem:[%s795 + $0x118] sm:$0xff]
    %v832 = vld [vmem:[%s795 + $0x120] sm:$0xff]
    %v833 = vld [vmem:[%s795 + $0x128] sm:$0xff]
    %v834 = vld [vmem:[%s795 + $0x130] sm:$0xff]
    %v835 = vld [vmem:[%s795 + $0x138] sm:$0xff]
    %v836 = vld [vmem:[%s795 + $0x140] sm:$0xff]
    %v837 = vld [vmem:[%s795 + $0x148] sm:$0xff]
    %v838 = vld [vmem:[%s795 + $0x150] sm:$0xff]
    %v839 = vld [vmem:[%s795 + $0x158] sm:$0xff]
    %v840 = vld [vmem:[%s795 + $0x160] sm:$0xff]
    %v841 = vld [vmem:[%s795 + $0x168] sm:$0xff]
    %v842 = vld [vmem:[%s795 + $0x170] sm:$0xff]
    %v843 = vld [vmem:[%s795 + $0x178] sm:$0xff]
    %v844 = vld [vmem:[%s795 + $0x180] sm:$0xff]
    %v845 = vld [vmem:[%s795 + $0x188] sm:$0xff]
    %v846 = vld [vmem:[%s795 + $0x190] sm:$0xff]
    %v847 = vld [vmem:[%s795 + $0x198] sm:$0xff]
    %v848 = vld [vmem:[%s795 + $0x1a0] sm:$0xff]
    %v849 = vld [vmem:[%s795 + $0x1a8] sm:$0xff]
    %v850 = vld [vmem:[%s795 + $0x1b0] sm:$0xff]
    %v851 = vld [vmem:[%s795 + $0x1b8] sm:$0xff]
    %v852 = vld [vmem:[%s795 + $0x1c0] sm:$0xff]
    %v853 = vld [vmem:[%s795 + $0x1c8] sm:$0xff]
    %v854 = vld [vmem:[%s795 + $0x1d0] sm:$0xff]
    %v855 = vld [vmem:[%s795 + $0x1d8] sm:$0xff]
    %v856 = vld [vmem:[%s795 + $0x1e0] sm:$0xff]
    %v857 = vld [vmem:[%s795 + $0x1e8] sm:$0xff]
    %v858 = vld [vmem:[%s795 + $0x1f0] sm:$0xff]
    %v859 = vld [vmem:[%s795 + $0x1f8] sm:$0xff]
    %s860 = scalar_lea.vmem %s4, 8
    %v861 = vld [vmem:[%s860] sm:$0x3]
    %v863 = vperm.slane %v861, 0
    %v864 = vperm.slane %v861, 1
    %867 = vmatpush.msra.mxu0 %v826
    %868 = vmatpush.msra.mxu0 %v824
    %869 = vmatpush.msra.mxu0 %v822
    %870 = vmatpush.msra.mxu0 %v820
    %871 = vmatpush.msra.mxu0 %v818
    %872 = vmatpush.msra.mxu0 %v816
    %873 = vmatpush.msra.mxu0 %v814
    %874 = vmatpush.msra.mxu0 %v812
    %875 = vmatpush.msra.mxu0 %v810
    %876 = vmatpush.msra.mxu0 %v808
    %877 = vmatpush.msra.mxu0 %v806
    %878 = vmatpush.msra.mxu0 %v804
    %879 = vmatpush.msra.mxu0 %v802
    %880 = vmatpush.msra.mxu0 %v800
    %881 = vmatpush.msra.mxu0 %v798
    %882 = vmatpush.msra.mxu0 %v796
    %883 = vmatmul.f32.gmra.mxu0 %v793
    %v884 = vpop.f32.mrf.mxu0
    %v885 = vadd.f32 %v863, %v884
    %886 = vdwg.mxu0
    %887 = vmatpush.msra.mxu0 %v858
    %888 = vmatpush.msra.mxu0 %v856
    %889 = vmatpush.msra.mxu0 %v854
    %890 = vmatpush.msra.mxu0 %v852
    %891 = vmatpush.msra.mxu0 %v850
    %892 = vmatpush.msra.mxu0 %v848
    %893 = vmatpush.msra.mxu0 %v846
    %894 = vmatpush.msra.mxu0 %v844
    %895 = vmatpush.msra.mxu0 %v842
    %896 = vmatpush.msra.mxu0 %v840
    %897 = vmatpush.msra.mxu0 %v838
    %898 = vmatpush.msra.mxu0 %v836
    %899 = vmatpush.msra.mxu0 %v834
    %900 = vmatpush.msra.mxu0 %v832
    %901 = vmatpush.msra.mxu0 %v830
    %902 = vmatpush.msra.mxu0 %v828
    %903 = vmatmul.f32.gmra.mxu0 %v794
    %v904 = vpop.f32.mrf.mxu0
    %v905 = vadd.f32 %v885, %v904
    %906 = vdwg.mxu0
    %907 = vmatpush.msra.mxu0 %v827
    %908 = vmatpush.msra.mxu0 %v825
    %909 = vmatpush.msra.mxu0 %v823
    %910 = vmatpush.msra.mxu0 %v821
    %911 = vmatpush.msra.mxu0 %v819
    %912 = vmatpush.msra.mxu0 %v817
    %913 = vmatpush.msra.mxu0 %v815
    %914 = vmatpush.msra.mxu0 %v813
    %915 = vmatpush.msra.mxu0 %v811
    %916 = vmatpush.msra.mxu0 %v809
    %917 = vmatpush.msra.mxu0 %v807
    %918 = vmatpush.msra.mxu0 %v805
    %919 = vmatpush.msra.mxu0 %v803
    %920 = vmatpush.msra.mxu0 %v801
    %921 = vmatpush.msra.mxu0 %v799
    %922 = vmatpush.msra.mxu0 %v797
    %923 = vmatmul.f32.gmra.mxu0 %v793
    %v924 = vpop.f32.mrf.mxu0
    %v925 = vadd.f32 %v864, %v924
    %926 = vdwg.mxu0
    %927 = vmatpush.msra.mxu0 %v859
    %928 = vmatpush.msra.mxu0 %v857
    %929 = vmatpush.msra.mxu0 %v855
    %930 = vmatpush.msra.mxu0 %v853
    %931 = vmatpush.msra.mxu0 %v851
    %932 = vmatpush.msra.mxu0 %v849
    %933 = vmatpush.msra.mxu0 %v847
    %934 = vmatpush.msra.mxu0 %v845
    %935 = vmatpush.msra.mxu0 %v843
    %936 = vmatpush.msra.mxu0 %v841
    %937 = vmatpush.msra.mxu0 %v839
    %938 = vmatpush.msra.mxu0 %v837
    %939 = vmatpush.msra.mxu0 %v835
    %940 = vmatpush.msra.mxu0 %v833
    %941 = vmatpush.msra.mxu0 %v831
    %942 = vmatpush.msra.mxu0 %v829
    %943 = vmatmul.f32.gmra.mxu0 %v794
    %v944 = vpop.f32.mrf.mxu0
    %v945 = vadd.f32 %v925, %v944
    %946 = vdwg.mxu0
    %v947 = vmax.f32 %v905, 0.0
    %v948 = vmax.f32 %v945, 0.0
    %v949 = vld [vmem:[%s5] sm:$0xff]
    %v950 = vld [vmem:[%s5 + $0x8] sm:$0xff]
    %v951 = vld [vmem:[%s5 + $0x10] sm:$0xff]
    %v952 = vld [vmem:[%s5 + $0x18] sm:$0xff]
    %v953 = vld [vmem:[%s5 + $0x20] sm:$0xff]
    %v954 = vld [vmem:[%s5 + $0x28] sm:$0xff]
    %v955 = vld [vmem:[%s5 + $0x30] sm:$0xff]
    %v956 = vld [vmem:[%s5 + $0x38] sm:$0xff]
    %v957 = vld [vmem:[%s5 + $0x40] sm:$0xff]
    %v958 = vld [vmem:[%s5 + $0x48] sm:$0xff]
    %v959 = vld [vmem:[%s5 + $0x50] sm:$0xff]
    %v960 = vld [vmem:[%s5 + $0x58] sm:$0xff]
    %v961 = vld [vmem:[%s5 + $0x60] sm:$0xff]
    %v962 = vld [vmem:[%s5 + $0x68] sm:$0xff]
    %v963 = vld [vmem:[%s5 + $0x70] sm:$0xff]
    %v964 = vld [vmem:[%s5 + $0x78] sm:$0xff]
    %v965 = vld [vmem:[%s5 + $0x80] sm:$0xff]
    %v966 = vld [vmem:[%s5 + $0x88] sm:$0xff]
    %v967 = vld [vmem:[%s5 + $0x90] sm:$0xff]
    %v968 = vld [vmem:[%s5 + $0x98] sm:$0xff]
    %v969 = vld [vmem:[%s5 + $0xa0] sm:$0xff]
    %v970 = vld [vmem:[%s5 + $0xa8] sm:$0xff]
    %v971 = vld [vmem:[%s5 + $0xb0] sm:$0xff]
    %v972 = vld [vmem:[%s5 + $0xb8] sm:$0xff]
    %v973 = vld [vmem:[%s5 + $0xc0] sm:$0xff]
    %v974 = vld [vmem:[%s5 + $0xc8] sm:$0xff]
    %v975 = vld [vmem:[%s5 + $0xd0] sm:$0xff]
    %v976 = vld [vmem:[%s5 + $0xd8] sm:$0xff]
    %v977 = vld [vmem:[%s5 + $0xe0] sm:$0xff]
    %v978 = vld [vmem:[%s5 + $0xe8] sm:$0xff]
    %v979 = vld [vmem:[%s5 + $0xf0] sm:$0xff]
    %v980 = vld [vmem:[%s5 + $0xf8] sm:$0xff]
    %v981 = vld [vmem:[%s6] sm:$0x1]
    %v983 = vperm.slane %v981, 0
    %985 = vmatpush.msra.mxu0 %v964
    %986 = vmatpush.msra.mxu0 %v963
    %987 = vmatpush.msra.mxu0 %v962
    %988 = vmatpush.msra.mxu0 %v961
    %989 = vmatpush.msra.mxu0 %v960
    %990 = vmatpush.msra.mxu0 %v959
    %991 = vmatpush.msra.mxu0 %v958
    %992 = vmatpush.msra.mxu0 %v957
    %993 = vmatpush.msra.mxu0 %v956
    %994 = vmatpush.msra.mxu0 %v955
    %995 = vmatpush.msra.mxu0 %v954
    %996 = vmatpush.msra.mxu0 %v953
    %997 = vmatpush.msra.mxu0 %v952
    %998 = vmatpush.msra.mxu0 %v951
    %999 = vmatpush.msra.mxu0 %v950
    %1000 = vmatpush.msra.mxu0 %v949
    %1001 = vmatmul.f32.gmra.mxu0 %v947
    %v1002 = vpop.f32.mrf.mxu0
    %v1003 = vadd.f32 %v983, %v1002
    %1004 = vdwg.mxu0
    %1005 = vmatpush.msra.mxu0 %v980
    %1006 = vmatpush.msra.mxu0 %v979
    %1007 = vmatpush.msra.mxu0 %v978
    %1008 = vmatpush.msra.mxu0 %v977
    %1009 = vmatpush.msra.mxu0 %v976
    %1010 = vmatpush.msra.mxu0 %v975
    %1011 = vmatpush.msra.mxu0 %v974
    %1012 = vmatpush.msra.mxu0 %v973
    %1013 = vmatpush.msra.mxu0 %v972
    %1014 = vmatpush.msra.mxu0 %v971
    %1015 = vmatpush.msra.mxu0 %v970
    %1016 = vmatpush.msra.mxu0 %v969
    %1017 = vmatpush.msra.mxu0 %v968
    %1018 = vmatpush.msra.mxu0 %v967
    %1019 = vmatpush.msra.mxu0 %v966
    %1020 = vmatpush.msra.mxu0 %v965
    %1021 = vmatmul.f32.gmra.mxu0 %v948
    %v1022 = vpop.f32.mrf.mxu0
    %v1023 = vadd.f32 %v1003, %v1022
    %1024 = vdwg.mxu0
    %1025 = vst [vmem:[#allocation2] sm:$0xff] %v1023
    // Predicated region
    $region30: #{sequence_predictor.1} parent=1 // pred_check
      _
    $region31: #{sequence_predictor.1} parent=1 // pred_check_branch
      %1027 = sbr.rel (0) target = $region33
    $region32: #{sequence_predictor.1} parent=1 // pred_region
      %1029 = vsyncadd [#allocation3], 0
      %s1031 = sshll.u32 [#allocation2], 4
      %s1032 = int_to_ptr.vmem [resolvable:$true] %s1031
      %s1033 = sshll.u32 %s7, 4
      %s1034 = int_to_ptr.hbm [resolvable:$true] %s1033
      %1036 = dma.vmem_to_hbm [thread:$0]  %s1032, 128, %s1034, [#allocation3]
    $region33: #{sequence_predictor.1} parent=1 // pred_fallthru
      _
    // Predicated region
    $region34: #{sequence_predictor.1} parent=1 // pred_check
      _
    $region35: #{sequence_predictor.1} parent=1 // pred_check_branch
      %1038 = sbr.rel (0) target = $region37
    $region36: #{sequence_predictor.1} parent=1 // pred_region
      %1040 = dma.done [#allocation3], 128
    $region37: #{sequence_predictor.1} parent=1 // pred_fallthru
      _
    %1041 = vsyncpa [#allocation3], 1

</llo_original>
